<compile_context>
chip_gen: v7x
topology: tpu7x:2x2x1
jax: 0.10.0
libtpu: 0.0.40
codegen_flags: <defaults>
</compile_context>

<pallas_src>
import functools

import jax
import jax.numpy as jnp
from jax.experimental import pallas as pl
from jax.experimental.pallas import tpu as pltpu


def _ensemble_mlp_kernel(x_ref, w0_ref, b0_ref, w1_ref, b1_ref,
                         w2m_ref, b2m_ref, w2v_ref, b2v_ref,
                         maxlv_ref, minlv_ref,
                         mean_ref, logvar_ref):
    """One invocation computes all E ensemble members.

    Shapes (f32, all VMEM-resident):
      x_ref                 (B, d_in)
      w0_ref                (d_in, E*h0)   fused layer-0 weight (x shared by all members)
      b0_ref                (1, E*h0)
      w1_ref                (E*h0, E*h1)   block-diagonal layer-1 weight
      b1_ref                (1, E*h1)
      w2m_ref / w2v_ref     (E*h1, E*half) block-diagonal mean / logvar heads
      b2m_ref / b2v_ref     (1, E*half)
      maxlv_ref / minlv_ref (1, E*half)    per-member tiled clamp bounds
      mean_ref / logvar_ref (B, E*half)    lane-dense outputs
    """
    x = x_ref[...]

    # Backbone layer 0 (fused over ensemble) + Swish.
    h = jnp.dot(x, w0_ref[...], preferred_element_type=jnp.float32) + b0_ref[...]
    h = h * jax.nn.sigmoid(h)

    # Backbone layer 1 (block-diagonal over ensemble) + Swish.
    h = jnp.dot(h, w1_ref[...], preferred_element_type=jnp.float32) + b1_ref[...]
    h = h * jax.nn.sigmoid(h)

    # Output heads: mean and logvar computed with pre-split weights so no
    # unaligned lane slicing happens inside the kernel.
    mean = jnp.dot(h, w2m_ref[...], preferred_element_type=jnp.float32) + b2m_ref[...]
    logvar = jnp.dot(h, w2v_ref[...], preferred_element_type=jnp.float32) + b2v_ref[...]

    maxlv = maxlv_ref[...]
    minlv = minlv_ref[...]
    # soft_clamp(x, min, max): x = max - softplus(max - x); x = min + softplus(x - min)
    logvar = maxlv - jax.nn.softplus(maxlv - logvar)
    logvar = minlv + jax.nn.softplus(logvar - minlv)

    mean_ref[...] = mean
    logvar_ref[...] = logvar


def _block_diag(w):
    """(E, a, b) -> (E*a, E*b) block-diagonal matrix with w[e] as the e-th block."""
    E, a, b = w.shape
    eye = jnp.eye(E, dtype=w.dtype)
    return (eye[:, None, :, None] * w[:, :, None, :]).reshape(E * a, E * b)


@jax.jit
def ensemble_dynamics_forward(obs_action, params):
    """obs_action: (B, obs_dim + action_dim). Returns (mean, logvar), each (E, B, half)."""
    w0, b0 = params["w0"], params["b0"]          # (E, d_in, h0), (E, 1, h0)
    w1, b1 = params["w1"], params["b1"]          # (E, h0, h1),  (E, 1, h1)
    w2, b2 = params["w2"], params["b2"]          # (E, h1, d_out), (E, 1, d_out)
    maxlv, minlv = params["max_logvar"], params["min_logvar"]   # (half,)

    E, d_in, h0 = w0.shape
    h1 = w1.shape[2]
    d_out = w2.shape[2]
    half = d_out // 2
    B = obs_action.shape[0]

    f32 = jnp.float32
    x = obs_action.astype(f32)

    # Layer 0 fused over the ensemble (x is shared by every member).
    w0f = jnp.transpose(w0.astype(f32), (1, 0, 2)).reshape(d_in, E * h0)
    b0f = b0.astype(f32).reshape(1, E * h0)
    # Layer 1 and the two output heads as block-diagonal matmuls.
    w1bd = _block_diag(w1.astype(f32))
    b1f = b1.astype(f32).reshape(1, E * h1)
    w2m = _block_diag(w2[:, :, :half].astype(f32))
    w2v = _block_diag(w2[:, :, half:].astype(f32))
    b2m = b2[:, :, :half].astype(f32).reshape(1, E * half)
    b2v = b2[:, :, half:].astype(f32).reshape(1, E * half)
    maxlv_t = jnp.tile(maxlv.astype(f32), E).reshape(1, E * half)
    minlv_t = jnp.tile(minlv.astype(f32), E).reshape(1, E * half)

    vmem = functools.partial(pl.BlockSpec, memory_space=pltpu.MemorySpace.VMEM)

    # Advisory cost estimate so XLA schedules this tiny custom call sensibly.
    flops = 2 * E * B * (d_in * h0 + h0 * h1 + h1 * d_out)
    transcendentals = E * B * (h0 + h1 + d_out)
    bytes_accessed = 4 * (x.size + w0f.size + b0f.size + w1bd.size + b1f.size
                          + w2m.size + w2v.size + b2m.size + b2v.size
                          + maxlv_t.size + minlv_t.size + 2 * B * E * half)

    mean_all, logvar_all = pl.pallas_call(
        _ensemble_mlp_kernel,
        out_shape=(
            jax.ShapeDtypeStruct((B, E * half), f32),
            jax.ShapeDtypeStruct((B, E * half), f32),
        ),
        in_specs=[vmem()] * 11,
        out_specs=(vmem(), vmem()),
        cost_estimate=pl.CostEstimate(
            flops=flops,
            transcendentals=transcendentals,
            bytes_accessed=bytes_accessed),
    )(x, w0f, b0f, w1bd, b1f, w2m, b2m, w2v, b2v, maxlv_t, minlv_t)

    # Restore the module's (E, B, half) layout — wrapper-side layout plumbing only.
    mean = jnp.transpose(mean_all.reshape(B, E, half), (1, 0, 2))
    logvar = jnp.transpose(logvar_all.reshape(B, E, half), (1, 0, 2))
    return mean, logvar


def init_params(key, obs_dim, action_dim, hidden_dims, num_ensemble, with_reward=True):
    """Deterministic init matching EnsembleDynamicsModel.__init__ shapes."""
    dims = [obs_dim + action_dim] + list(hidden_dims)
    out_dim = 2 * (obs_dim + int(with_reward))
    layer_dims = list(zip(dims[:-1], dims[1:])) + [(dims[-1], out_dim)]

    params = {}
    keys = jax.random.split(key, len(layer_dims))
    for li, ((d_in, d_out), k) in enumerate(zip(layer_dims, keys)):
        std = 1.0 / (2.0 * (d_in ** 0.5))
        w = std * jax.random.truncated_normal(
            k, -2.0, 2.0, (num_ensemble, d_in, d_out), dtype=jnp.float32)
        b = jnp.zeros((num_ensemble, 1, d_out), dtype=jnp.float32)
        params[f"w{li}"] = w
        params[f"b{li}"] = b

    half = obs_dim + int(with_reward)
    params["max_logvar"] = jnp.full((half,), 0.5, dtype=jnp.float32)
    params["min_logvar"] = jnp.full((half,), -10.0, dtype=jnp.float32)
    return params


def _reference_forward(obs_action, params):
    """Pure-JAX reference of the PyTorch forward for a correctness check."""
    x = obs_action.astype(jnp.float32)
    h = jnp.einsum("ij,bjk->bik", x, params["w0"]) + params["b0"]
    h = h * jax.nn.sigmoid(h)
    h = jnp.einsum("bij,bjk->bik", h, params["w1"]) + params["b1"]
    h = h * jax.nn.sigmoid(h)
    out = jnp.einsum("bij,bjk->bik", h, params["w2"]) + params["b2"]
    half = out.shape[-1] // 2
    mean, logvar = out[..., :half], out[..., half:]
    maxlv, minlv = params["max_logvar"], params["min_logvar"]
    logvar = maxlv - jax.nn.softplus(maxlv - logvar)
    logvar = minlv + jax.nn.softplus(logvar - minlv)
    return mean, logvar


if __name__ == "__main__":
    obs_dim, action_dim = 11, 3
    hidden_dims = (32, 32)
    num_ensemble = 7
    batch = 8

    key = jax.random.PRNGKey(0)
    k_params, k_x = jax.random.split(key)
    params = init_params(k_params, obs_dim, action_dim, hidden_dims, num_ensemble)

    obs_action = jax.random.normal(k_x, (batch, obs_dim + action_dim), dtype=jnp.float32)

    mean, logvar = ensemble_dynamics_forward(obs_action, params)
    mean = jax.block_until_ready(mean)
    logvar = jax.block_until_ready(logvar)

    ref_mean, ref_logvar = _reference_forward(obs_action, params)
    assert mean.shape == (num_ensemble, batch, obs_dim + 1)
    assert logvar.shape == (num_ensemble, batch, obs_dim + 1)
    assert jnp.allclose(mean, ref_mean, atol=1e-4, rtol=1e-4)
    assert jnp.allclose(logvar, ref_logvar, atol=1e-4, rtol=1e-4)

    # TODO(synk): load_save/update_save/get_decay_loss/set_elites/random_elite_idxs are
    # parameter-bookkeeping methods, not part of the forward pass, and are not kernels.
    print("KERNEL_OK")
</pallas_src>

<mosaic_0001>
module attributes {stable_mosaic.version = 11 : i64} {
  func.func @_ensemble_mlp_kernel(%arg0: memref<8x14xf32, #tpu.memory_space<vmem>>, %arg1: memref<14x224xf32, #tpu.memory_space<vmem>>, %arg2: memref<1x224xf32, #tpu.memory_space<vmem>>, %arg3: memref<224x224xf32, #tpu.memory_space<vmem>>, %arg4: memref<1x224xf32, #tpu.memory_space<vmem>>, %arg5: memref<224x84xf32, #tpu.memory_space<vmem>>, %arg6: memref<1x84xf32, #tpu.memory_space<vmem>>, %arg7: memref<224x84xf32, #tpu.memory_space<vmem>>, %arg8: memref<1x84xf32, #tpu.memory_space<vmem>>, %arg9: memref<1x84xf32, #tpu.memory_space<vmem>>, %arg10: memref<1x84xf32, #tpu.memory_space<vmem>>, %arg11: memref<8x84xf32, #tpu.memory_space<vmem>>, %arg12: memref<8x84xf32, #tpu.memory_space<vmem>>) attributes {dimension_semantics = [], scalar_prefetch = 0 : i64, scratch_operands = 0 : i64, tpu.core_type = #tpu.core_type<tc>} {
    %c0 = arith.constant 0 : index
    %c0_0 = arith.constant 0 : index
    %0 = vector.load %arg0[%c0, %c0_0] : memref<8x14xf32, #tpu.memory_space<vmem>>, vector<8x14xf32>
    %c0_1 = arith.constant 0 : index
    %c0_2 = arith.constant 0 : index
    %1 = vector.load %arg1[%c0_1, %c0_2] : memref<14x224xf32, #tpu.memory_space<vmem>>, vector<14x224xf32>
    %cst = arith.constant dense<0.000000e+00> : vector<8x224xf32>
    %2 = tpu.matmul %0, %1, %cst {dimension_numbers = #tpu.dot_dimension_numbers<[1], [0], [0], [1], [0, 0, 1, 1], [], []>} : vector<8x14xf32>, vector<14x224xf32>, vector<8x224xf32> -> vector<8x224xf32>
    %c0_3 = arith.constant 0 : index
    %c0_4 = arith.constant 0 : index
    %3 = vector.load %arg2[%c0_3, %c0_4] : memref<1x224xf32, #tpu.memory_space<vmem>>, vector<1x224xf32>
    %4 = vector.broadcast %3 : vector<1x224xf32> to vector<8x224xf32>
    %5 = arith.addf %2, %4 : vector<8x224xf32>
    %6 = arith.negf %5 : vector<8x224xf32>
    %7 = math.exp %6 : vector<8x224xf32>
    %cst_5 = arith.constant 1.000000e+00 : f32
    %8 = vector.broadcast %cst_5 : f32 to vector<8x224xf32>
    %9 = arith.addf %8, %7 : vector<8x224xf32>
    %10 = arith.divf %8, %9 : vector<8x224xf32>
    %11 = arith.mulf %5, %10 : vector<8x224xf32>
    %c0_6 = arith.constant 0 : index
    %c0_7 = arith.constant 0 : index
    %12 = vector.load %arg3[%c0_6, %c0_7] : memref<224x224xf32, #tpu.memory_space<vmem>>, vector<224x224xf32>
    %cst_8 = arith.constant dense<0.000000e+00> : vector<8x224xf32>
    %13 = tpu.matmul %11, %12, %cst_8 {dimension_numbers = #tpu.dot_dimension_numbers<[1], [0], [0], [1], [0, 0, 1, 1], [], []>} : vector<8x224xf32>, vector<224x224xf32>, vector<8x224xf32> -> vector<8x224xf32>
    %c0_9 = arith.constant 0 : index
    %c0_10 = arith.constant 0 : index
    %14 = vector.load %arg4[%c0_9, %c0_10] : memref<1x224xf32, #tpu.memory_space<vmem>>, vector<1x224xf32>
    %15 = vector.broadcast %14 : vector<1x224xf32> to vector<8x224xf32>
    %16 = arith.addf %13, %15 : vector<8x224xf32>
    %17 = arith.negf %16 : vector<8x224xf32>
    %18 = math.exp %17 : vector<8x224xf32>
    %cst_11 = arith.constant 1.000000e+00 : f32
    %19 = vector.broadcast %cst_11 : f32 to vector<8x224xf32>
    %20 = arith.addf %19, %18 : vector<8x224xf32>
    %21 = arith.divf %19, %20 : vector<8x224xf32>
    %22 = arith.mulf %16, %21 : vector<8x224xf32>
    %c0_12 = arith.constant 0 : index
    %c0_13 = arith.constant 0 : index
    %23 = vector.load %arg5[%c0_12, %c0_13] : memref<224x84xf32, #tpu.memory_space<vmem>>, vector<224x84xf32>
    %cst_14 = arith.constant dense<0.000000e+00> : vector<8x84xf32>
    %24 = tpu.matmul %22, %23, %cst_14 {dimension_numbers = #tpu.dot_dimension_numbers<[1], [0], [0], [1], [0, 0, 1, 1], [], []>} : vector<8x224xf32>, vector<224x84xf32>, vector<8x84xf32> -> vector<8x84xf32>
    %c0_15 = arith.constant 0 : index
    %c0_16 = arith.constant 0 : index
    %25 = vector.load %arg6[%c0_15, %c0_16] : memref<1x84xf32, #tpu.memory_space<vmem>>, vector<1x84xf32>
    %26 = vector.broadcast %25 : vector<1x84xf32> to vector<8x84xf32>
    %27 = arith.addf %24, %26 : vector<8x84xf32>
    %c0_17 = arith.constant 0 : index
    %c0_18 = arith.constant 0 : index
    %28 = vector.load %arg7[%c0_17, %c0_18] : memref<224x84xf32, #tpu.memory_space<vmem>>, vector<224x84xf32>
    %cst_19 = arith.constant dense<0.000000e+00> : vector<8x84xf32>
    %29 = tpu.matmul %22, %28, %cst_19 {dimension_numbers = #tpu.dot_dimension_numbers<[1], [0], [0], [1], [0, 0, 1, 1], [], []>} : vector<8x224xf32>, vector<224x84xf32>, vector<8x84xf32> -> vector<8x84xf32>
    %c0_20 = arith.constant 0 : index
    %c0_21 = arith.constant 0 : index
    %30 = vector.load %arg8[%c0_20, %c0_21] : memref<1x84xf32, #tpu.memory_space<vmem>>, vector<1x84xf32>
    %31 = vector.broadcast %30 : vector<1x84xf32> to vector<8x84xf32>
    %32 = arith.addf %29, %31 : vector<8x84xf32>
    %c0_22 = arith.constant 0 : index
    %c0_23 = arith.constant 0 : index
    %33 = vector.load %arg9[%c0_22, %c0_23] : memref<1x84xf32, #tpu.memory_space<vmem>>, vector<1x84xf32>
    %c0_24 = arith.constant 0 : index
    %c0_25 = arith.constant 0 : index
    %34 = vector.load %arg10[%c0_24, %c0_25] : memref<1x84xf32, #tpu.memory_space<vmem>>, vector<1x84xf32>
    %35 = vector.broadcast %33 : vector<1x84xf32> to vector<8x84xf32>
    %36 = arith.subf %35, %32 : vector<8x84xf32>
    %cst_26 = arith.constant 0.000000e+00 : f32
    %37 = vector.broadcast %cst_26 : f32 to vector<8x84xf32>
    %38 = arith.maximumf %36, %37 : vector<8x84xf32>
    %39 = vector.broadcast %cst_26 : f32 to vector<8x84xf32>
    %40 = arith.subf %36, %39 : vector<8x84xf32>
    %41 = arith.cmpf one, %40, %40 : vector<8x84xf32>
    %42 = vector.broadcast %cst_26 : f32 to vector<8x84xf32>
    %43 = arith.addf %36, %42 : vector<8x84xf32>
    %44 = math.absf %40 : vector<8x84xf32>
    %cst_27 = arith.constant 0.000000e+00 : f32
    %45 = vector.broadcast %cst_27 : f32 to vector<8x84xf32>
    %46 = arith.subf %45, %44 : vector<8x84xf32>
    %47 = math.exp %46 : vector<8x84xf32>
    %48 = math.log1p %47 : vector<8x84xf32>
    %49 = arith.addf %38, %48 : vector<8x84xf32>
    %50 = arith.select %41, %43, %49 : vector<8x84xi1>, vector<8x84xf32>
    %51 = vector.broadcast %33 : vector<1x84xf32> to vector<8x84xf32>
    %52 = arith.subf %51, %50 : vector<8x84xf32>
    %53 = vector.broadcast %34 : vector<1x84xf32> to vector<8x84xf32>
    %54 = arith.subf %52, %53 : vector<8x84xf32>
    %cst_28 = arith.constant 0.000000e+00 : f32
    %55 = vector.broadcast %cst_28 : f32 to vector<8x84xf32>
    %56 = arith.maximumf %54, %55 : vector<8x84xf32>
    %57 = vector.broadcast %cst_28 : f32 to vector<8x84xf32>
    %58 = arith.subf %54, %57 : vector<8x84xf32>
    %59 = arith.cmpf one, %58, %58 : vector<8x84xf32>
    %60 = vector.broadcast %cst_28 : f32 to vector<8x84xf32>
    %61 = arith.addf %54, %60 : vector<8x84xf32>
    %62 = math.absf %58 : vector<8x84xf32>
    %cst_29 = arith.constant 0.000000e+00 : f32
    %63 = vector.broadcast %cst_29 : f32 to vector<8x84xf32>
    %64 = arith.subf %63, %62 : vector<8x84xf32>
    %65 = math.exp %64 : vector<8x84xf32>
    %66 = math.log1p %65 : vector<8x84xf32>
    %67 = arith.addf %56, %66 : vector<8x84xf32>
    %68 = arith.select %59, %61, %67 : vector<8x84xi1>, vector<8x84xf32>
    %69 = vector.broadcast %34 : vector<1x84xf32> to vector<8x84xf32>
    %70 = arith.addf %69, %68 : vector<8x84xf32>
    %c0_30 = arith.constant 0 : index
    %c0_31 = arith.constant 0 : index
    %71 = vector.load %arg11[%c0_30, %c0_31] : memref<8x84xf32, #tpu.memory_space<vmem>>, vector<8x84xf32>
    tpu.vector_store %arg11[%c0_30, %c0_31], %27 {strides = array<i32>} : memref<8x84xf32, #tpu.memory_space<vmem>>, vector<8x84xf32>,
    %c0_32 = arith.constant 0 : index
    %c0_33 = arith.constant 0 : index
    %72 = vector.load %arg12[%c0_32, %c0_33] : memref<8x84xf32, #tpu.memory_space<vmem>>, vector<8x84xf32>
    tpu.vector_store %arg12[%c0_32, %c0_33], %70 {strides = array<i32>} : memref<8x84xf32, #tpu.memory_space<vmem>>, vector<8x84xf32>,
    return
  }
}

</mosaic_0001>

<llo_original>
// kernel: tile.13
$region0: #{tile.13}
  #allocation0 [shape = 's32[1]{0}', space=sflag, size = 0x4, scoped, tag = 'scoped memory for tile.13']
  %s0 = inlined_call_operand.vmem [shape: f32[12], index: 0, kind: input, shape index: {}]
  %s1 = inlined_call_operand.vmem [shape: f32[7,12], index: 1, kind: output, shape index: {}]
  // Predicated region
  $region2: #{tile.13} parent=0 // pred_check
    _
  $region3: #{tile.13} parent=0 // pred_check_branch
    %3 = sbr.rel (0) target = $region5
  $region4: #{tile.13} parent=0 // pred_region
    _
  $region5: #{tile.13} parent=0 // pred_fallthru
    _
  %v4 = vld [vmem:[%s0] ss:$0 sm:$0xff]
  %5 = vst [vmem:[%s1] sm:$0xff] %v4

// kernel: ensemble_dynamics_forward.1
$region0: #{ensemble_dynamics_forward.1}
  #allocation0 [shape = 'u32[]', space=smem, size = 0x4, offset = 0x4, fixed_abs, tag = 'smem constant byte address 0x4 - core index']
  #allocation1 [shape = 'u32[144,128]{1,0:T(1,128)}', space=vmem, size = 0x12000, scoped, tag = 'internal scratch']
  %s0 = inlined_call_operand.vmem [shape: f32[8,14], index: 0, kind: input, shape index: {}]
  %s1 = inlined_call_operand.vmem [shape: f32[14,224], index: 1, kind: input, shape index: {}]
  %s2 = inlined_call_operand.vmem [shape: f32[1,224], index: 2, kind: input, shape index: {}]
  %s3 = inlined_call_operand.vmem [shape: f32[224,224], index: 3, kind: input, shape index: {}]
  %s4 = inlined_call_operand.vmem [shape: f32[1,224], index: 4, kind: input, shape index: {}]
  %s5 = inlined_call_operand.vmem [shape: f32[224,84], index: 5, kind: input, shape index: {}]
  %s6 = inlined_call_operand.vmem [shape: f32[1,84], index: 6, kind: input, shape index: {}]
  %s7 = inlined_call_operand.vmem [shape: f32[224,84], index: 7, kind: input, shape index: {}]
  %s8 = inlined_call_operand.vmem [shape: f32[1,84], index: 8, kind: input, shape index: {}]
  %s9 = inlined_call_operand.vmem [shape: f32[1,84], index: 9, kind: input, shape index: {}]
  %s10 = inlined_call_operand.vmem [shape: f32[1,84], index: 10, kind: input, shape index: {}]
  %s11 = inlined_call_operand.vmem [shape: f32[8,84], index: 11, kind: output, shape index: {0}]
  %s12 = inlined_call_operand.vmem [shape: f32[8,84], index: 12, kind: output, shape index: {1}]
  %13 = xla_tuple %s11, %s12
  %s14 = sld [smem:[#allocation0]]
  $region62: #{ensemble_dynamics_forward.1} parent=0
    _
  %s16 = ssub.s32 1, %s14
  %s17 = scalar_select 0, %s16, %s14
  // Predicated region
  $region2: #{ensemble_dynamics_forward.1} parent=0 // pred_check
    _
  $region3: #{ensemble_dynamics_forward.1} parent=0 // pred_check_branch
    %19 = sbr.rel (0) target = $region5
  $region4: #{ensemble_dynamics_forward.1} parent=0 // pred_region
    _
  $region5: #{ensemble_dynamics_forward.1} parent=0 // pred_fallthru
    _
  // Predicated region
  $region6: #{ensemble_dynamics_forward.1} parent=0 // pred_check
    _
  $region7: #{ensemble_dynamics_forward.1} parent=0 // pred_check_branch
    %21 = sbr.rel (0) target = $region9
  $region8: #{ensemble_dynamics_forward.1} parent=0 // pred_region
    _
  $region9: #{ensemble_dynamics_forward.1} parent=0 // pred_fallthru
    _
  // Predicated region
  $region10: #{ensemble_dynamics_forward.1} parent=0 // pred_check
    _
  $region11: #{ensemble_dynamics_forward.1} parent=0 // pred_check_branch
    %23 = sbr.rel (0) target = $region13
  $region12: #{ensemble_dynamics_forward.1} parent=0 // pred_region
    _
  $region13: #{ensemble_dynamics_forward.1} parent=0 // pred_fallthru
    _
  // Predicated region
  $region14: #{ensemble_dynamics_forward.1} parent=0 // pred_check
    _
  $region15: #{ensemble_dynamics_forward.1} parent=0 // pred_check_branch
    %25 = sbr.rel (0) target = $region17
  $region16: #{ensemble_dynamics_forward.1} parent=0 // pred_region
    _
  $region17: #{ensemble_dynamics_forward.1} parent=0 // pred_fallthru
    _
  // Predicated region
  $region18: #{ensemble_dynamics_forward.1} parent=0 // pred_check
    _
  $region19: #{ensemble_dynamics_forward.1} parent=0 // pred_check_branch
    %27 = sbr.rel (0) target = $region21
  $region20: #{ensemble_dynamics_forward.1} parent=0 // pred_region
    _
  $region21: #{ensemble_dynamics_forward.1} parent=0 // pred_fallthru
    _
  // Predicated region
  $region22: #{ensemble_dynamics_forward.1} parent=0 // pred_check
    _
  $region23: #{ensemble_dynamics_forward.1} parent=0 // pred_check_branch
    %29 = sbr.rel (0) target = $region25
  $region24: #{ensemble_dynamics_forward.1} parent=0 // pred_region
    _
  $region25: #{ensemble_dynamics_forward.1} parent=0 // pred_fallthru
    _
  // Predicated region
  $region26: #{ensemble_dynamics_forward.1} parent=0 // pred_check
    _
  $region27: #{ensemble_dynamics_forward.1} parent=0 // pred_check_branch
    %31 = sbr.rel (0) target = $region29
  $region28: #{ensemble_dynamics_forward.1} parent=0 // pred_region
    _
  $region29: #{ensemble_dynamics_forward.1} parent=0 // pred_fallthru
    _
  // Predicated region
  $region30: #{ensemble_dynamics_forward.1} parent=0 // pred_check
    _
  $region31: #{ensemble_dynamics_forward.1} parent=0 // pred_check_branch
    %33 = sbr.rel (0) target = $region33
  $region32: #{ensemble_dynamics_forward.1} parent=0 // pred_region
    _
  $region33: #{ensemble_dynamics_forward.1} parent=0 // pred_fallthru
    _
  // Predicated region
  $region34: #{ensemble_dynamics_forward.1} parent=0 // pred_check
    _
  $region35: #{ensemble_dynamics_forward.1} parent=0 // pred_check_branch
    %35 = sbr.rel (0) target = $region37
  $region36: #{ensemble_dynamics_forward.1} parent=0 // pred_region
    _
  $region37: #{ensemble_dynamics_forward.1} parent=0 // pred_fallthru
    _
  // Predicated region
  $region38: #{ensemble_dynamics_forward.1} parent=0 // pred_check
    _
  $region39: #{ensemble_dynamics_forward.1} parent=0 // pred_check_branch
    %37 = sbr.rel (0) target = $region41
  $region40: #{ensemble_dynamics_forward.1} parent=0 // pred_region
    _
  $region41: #{ensemble_dynamics_forward.1} parent=0 // pred_fallthru
    _
  // Predicated region
  $region42: #{ensemble_dynamics_forward.1} parent=0 // pred_check
    _
  $region43: #{ensemble_dynamics_forward.1} parent=0 // pred_check_branch
    %39 = sbr.rel (0) target = $region45
  $region44: #{ensemble_dynamics_forward.1} parent=0 // pred_region
    _
  $region45: #{ensemble_dynamics_forward.1} parent=0 // pred_fallthru
    _
  %v40 = vld [vmem:[%s0] sm:$0xff]
  %v41 = vld [vmem:[%s1] sm:$0xff]
  %v42 = vld [vmem:[%s1 + $0x8] sm:$0xff]
  %v43 = vld [vmem:[%s1 + $0x10] sm:$0x3f]
  %v44 = vld [vmem:[%s1 + $0x18] sm:$0x3f]
  %v45 = vld [vmem:[%s2] sm:$0x3]
  %v47 = vlaneseq
  %v48 = vshrl.u32 %v47, 7
  %v49 = vsub.s32 0, %v48
  %v50 = vrot.slane %v45, %v49
  %v51 = vlaneseq
  %v52 = vshrl.u32 %v51, 7
  %v53 = vsub.s32 1, %v52
  %v54 = vrot.slane %v45, %v53
  %vm57 = vcmask 113664
  %v59 = vsel %vm57, %v40, 0
  %vm61 = vcmask 1045504
  %v63 = vsel %vm61, %v43, 0
  %v66 = vsel %vm61, %v44, 0
  %68 = vmatprep.subr.mxu0 %v42
  %69 = vmatpush1.msra.mxu0 %v41
  %70 = vmatprep.subr.mxu0 %v66
  %71 = vmatpush1.msra.mxu0 %v63
  %72 = vmatprep.subr.mxu0 0.0
  %73 = vmatpush1.msra.mxu0 0.0
  %74 = vmatprep.subr.mxu0 0.0
  %75 = vmatpush1.msra.mxu0 0.0
  %76 = vmatprep.subr.mxu0 0.0
  %77 = vmatpush1.msra.mxu0 0.0
  %78 = vmatprep.subr.mxu0 0.0
  %79 = vmatpush1.msra.mxu0 0.0
  %80 = vmatprep.subr.mxu0 0.0
  %81 = vmatpush1.msra.mxu0 0.0
  %82 = vmatprep.subr.mxu0 0.0
  %83 = vmatpush1.msra.mxu0 0.0
  %84 = vmatprep.subr.mxu0 0.0
  %85 = vmatpush1.msra.mxu0 0.0
  %86 = vmatprep.subr.mxu0 0.0
  %87 = vmatpush1.msra.mxu0 0.0
  %88 = vmatprep.subr.mxu0 0.0
  %89 = vmatpush1.msra.mxu0 0.0
  %90 = vmatprep.subr.mxu0 0.0
  %91 = vmatpush1.msra.mxu0 0.0
  %92 = vmatprep.subr.mxu0 0.0
  %93 = vmatpush1.msra.mxu0 0.0
  %94 = vmatprep.subr.mxu0 0.0
  %95 = vmatpush1.msra.mxu0 0.0
  %96 = vmatprep.subr.mxu0 0.0
  %97 = vmatpush1.msra.mxu0 0.0
  %98 = vmatprep.subr.mxu0 0.0
  %99 = vmatpush1.msra.mxu0 0.0
  %100 = vmatprep.subr.mxu0 0.0
  %101 = vmatpush1.msra.mxu0 0.0
  %102 = vmatprep.subr.mxu0 0.0
  %103 = vmatpush1.msra.mxu0 0.0
  %104 = vmatprep.subr.mxu0 0.0
  %105 = vmatpush1.msra.mxu0 0.0
  %106 = vmatprep.subr.mxu0 0.0
  %107 = vmatpush1.msra.mxu0 0.0
  %108 = vmatprep.subr.mxu0 0.0
  %109 = vmatpush1.msra.mxu0 0.0
  %110 = vmatprep.subr.mxu0 0.0
  %111 = vmatpush1.msra.mxu0 0.0
  %112 = vmatprep.subr.mxu0 0.0
  %113 = vmatpush1.msra.mxu0 0.0
  %114 = vmatprep.subr.mxu0 0.0
  %115 = vmatpush1.msra.mxu0 0.0
  %116 = vmatprep.subr.mxu0 0.0
  %117 = vmatpush1.msra.mxu0 0.0
  %118 = vmatprep.subr.mxu0 0.0
  %119 = vmatpush1.msra.mxu0 0.0
  %120 = vmatprep.subr.mxu0 0.0
  %121 = vmatpush1.msra.mxu0 0.0
  %122 = vmatprep.subr.mxu0 0.0
  %123 = vmatpush1.msra.mxu0 0.0
  %124 = vmatprep.subr.mxu0 0.0
  %125 = vmatpush1.msra.mxu0 0.0
  %126 = vmatprep.subr.mxu0 0.0
  %127 = vmatpush1.msra.mxu0 0.0
  %128 = vmatprep.subr.mxu0 0.0
  %129 = vmatpush1.msra.mxu0 0.0
  %130 = vmatprep.subr.mxu0 0.0
  %131 = vmatpush1.msra.mxu0 0.0
  %132 = vmatprep.mubr.f32.mxu0 0.0
  %133 = vmatmul.mubr.f32.gmra.mrb[0].mxu0 %v59
  %v134 = vpop.f32.mrb[0].mxu0
  %v135 = vadd.f32 %v50, %v134
  %v136 = vpop.f32.mrb[0].mxu0
  %v137 = vadd.f32 %v54, %v136
  %138 = vdwg.mxu0
  %v139 = vxor.u32 %v135, 2147483648
  %v140 = vxor.u32 %v137, 2147483648
  %v141 = vmul.f32 %v139, 1.442695
  %v142 = vpow.pop %v141
  %v143 = vmul.f32 %v140, 1.442695
  %v144 = vpow.pop %v143
  %v145 = vadd.f32 %v142, 1.0
  %v146 = vadd.f32 %v144, 1.0
  %v147 = vrcp.pop %v145
  %v148 = vmul.f32 1.0, %v147
  %v149 = vrcp.pop %v146
  %v150 = vmul.f32 1.0, %v149
  %v151 = vmul.f32 %v135, %v148
  %v152 = vmul.f32 %v137, %v150
  %v153 = vld [vmem:[%s3] sm:$0xff]
  %v154 = vld [vmem:[%s3 + $0x8] sm:$0xff]
  %v155 = vld [vmem:[%s3 + $0x10] sm:$0xff]
  %v156 = vld [vmem:[%s3 + $0x18] sm:$0xff]
  %v157 = vld [vmem:[%s3 + $0x20] sm:$0xff]
  %v158 = vld [vmem:[%s3 + $0x28] sm:$0xff]
  %v159 = vld [vmem:[%s3 + $0x30] sm:$0xff]
  %v160 = vld [vmem:[%s3 + $0x38] sm:$0xff]
  %v161 = vld [vmem:[%s3 + $0x40] sm:$0xff]
  %v162 = vld [vmem:[%s3 + $0x48] sm:$0xff]
  %v163 = vld [vmem:[%s3 + $0x50] sm:$0xff]
  %v164 = vld [vmem:[%s3 + $0x58] sm:$0xff]
  %v165 = vld [vmem:[%s3 + $0x60] sm:$0xff]
  %v166 = vld [vmem:[%s3 + $0x68] sm:$0xff]
  %v167 = vld [vmem:[%s3 + $0x70] sm:$0xff]
  %v168 = vld [vmem:[%s3 + $0x78] sm:$0xff]
  %v169 = vld [vmem:[%s3 + $0x80] sm:$0xff]
  %v170 = vld [vmem:[%s3 + $0x88] sm:$0xff]
  %v171 = vld [vmem:[%s3 + $0x90] sm:$0xff]
  %v172 = vld [vmem:[%s3 + $0x98] sm:$0xff]
  %v173 = vld [vmem:[%s3 + $0xa0] sm:$0xff]
  %v174 = vld [vmem:[%s3 + $0xa8] sm:$0xff]
  %v175 = vld [vmem:[%s3 + $0xb0] sm:$0xff]
  %v176 = vld [vmem:[%s3 + $0xb8] sm:$0xff]
  %v177 = vld [vmem:[%s3 + $0xc0] sm:$0xff]
  %v178 = vld [vmem:[%s3 + $0xc8] sm:$0xff]
  %v179 = vld [vmem:[%s3 + $0xd0] sm:$0xff]
  %v180 = vld [vmem:[%s3 + $0xd8] sm:$0xff]
  %v181 = vld [vmem:[%s3 + $0xe0] sm:$0xff]
  %v182 = vld [vmem:[%s3 + $0xe8] sm:$0xff]
  %v183 = vld [vmem:[%s3 + $0xf0] sm:$0xff]
  %v184 = vld [vmem:[%s3 + $0xf8] sm:$0xff]
  %v185 = vld [vmem:[%s3 + $0x100] sm:$0xff]
  %v186 = vld [vmem:[%s3 + $0x108] sm:$0xff]
  %v187 = vld [vmem:[%s3 + $0x110] sm:$0xff]
  %v188 = vld [vmem:[%s3 + $0x118] sm:$0xff]
  %v189 = vld [vmem:[%s3 + $0x120] sm:$0xff]
  %v190 = vld [vmem:[%s3 + $0x128] sm:$0xff]
  %v191 = vld [vmem:[%s3 + $0x130] sm:$0xff]
  %v192 = vld [vmem:[%s3 + $0x138] sm:$0xff]
  %v193 = vld [vmem:[%s3 + $0x140] sm:$0xff]
  %v194 = vld [vmem:[%s3 + $0x148] sm:$0xff]
  %v195 = vld [vmem:[%s3 + $0x150] sm:$0xff]
  %v196 = vld [vmem:[%s3 + $0x158] sm:$0xff]
  %v197 = vld [vmem:[%s3 + $0x160] sm:$0xff]
  %v198 = vld [vmem:[%s3 + $0x168] sm:$0xff]
  %v199 = vld [vmem:[%s3 + $0x170] sm:$0xff]
  %v200 = vld [vmem:[%s3 + $0x178] sm:$0xff]
  %v201 = vld [vmem:[%s3 + $0x180] sm:$0xff]
  %v202 = vld [vmem:[%s3 + $0x188] sm:$0xff]
  %v203 = vld [vmem:[%s3 + $0x190] sm:$0xff]
  %v204 = vld [vmem:[%s3 + $0x198] sm:$0xff]
  %v205 = vld [vmem:[%s3 + $0x1a0] sm:$0xff]
  %v206 = vld [vmem:[%s3 + $0x1a8] sm:$0xff]
  %v207 = vld [vmem:[%s3 + $0x1b0] sm:$0xff]
  %v208 = vld [vmem:[%s3 + $0x1b8] sm:$0xff]
  %v209 = vld [vmem:[%s4] sm:$0x3]
  %v211 = vlaneseq
  %v212 = vshrl.u32 %v211, 7
  %v213 = vsub.s32 0, %v212
  %v214 = vrot.slane %v209, %v213
  %v215 = vlaneseq
  %v216 = vshrl.u32 %v215, 7
  %v217 = vsub.s32 1, %v216
  %v218 = vrot.slane %v209, %v217
  %vm221 = vcmask 785408
  %v223 = vsel %vm221, %v152, 0
  %225 = vmatprep.subr.mxu0 %v154
  %226 = vmatpush1.msra.mxu0 %v153
  %227 = vmatprep.subr.mxu0 %v156
  %228 = vmatpush1.msra.mxu0 %v155
  %229 = vmatprep.subr.mxu0 %v158
  %230 = vmatpush1.msra.mxu0 %v157
  %231 = vmatprep.subr.mxu0 %v160
  %232 = vmatpush1.msra.mxu0 %v159
  %233 = vmatprep.subr.mxu0 %v162
  %234 = vmatpush1.msra.mxu0 %v161
  %235 = vmatprep.subr.mxu0 %v164
  %236 = vmatpush1.msra.mxu0 %v163
  %237 = vmatprep.subr.mxu0 %v166
  %238 = vmatpush1.msra.mxu0 %v165
  %239 = vmatprep.subr.mxu0 %v168
  %240 = vmatpush1.msra.mxu0 %v167
  %241 = vmatprep.subr.mxu0 %v170
  %242 = vmatpush1.msra.mxu0 %v169
  %243 = vmatprep.subr.mxu0 %v172
  %244 = vmatpush1.msra.mxu0 %v171
  %245 = vmatprep.subr.mxu0 %v174
  %246 = vmatpush1.msra.mxu0 %v173
  %247 = vmatprep.subr.mxu0 %v176
  %248 = vmatpush1.msra.mxu0 %v175
  %249 = vmatprep.subr.mxu0 %v178
  %250 = vmatpush1.msra.mxu0 %v177
  %251 = vmatprep.subr.mxu0 %v180
  %252 = vmatpush1.msra.mxu0 %v179
  %253 = vmatprep.subr.mxu0 %v182
  %254 = vmatpush1.msra.mxu0 %v181
  %255 = vmatprep.subr.mxu0 %v184
  %256 = vmatpush1.msra.mxu0 %v183
  %257 = vmatprep.subr.mxu0 %v186
  %258 = vmatpush1.msra.mxu0 %v185
  %259 = vmatprep.subr.mxu0 %v188
  %260 = vmatpush1.msra.mxu0 %v187
  %261 = vmatprep.subr.mxu0 %v190
  %262 = vmatpush1.msra.mxu0 %v189
  %263 = vmatprep.subr.mxu0 %v192
  %264 = vmatpush1.msra.mxu0 %v191
  %265 = vmatprep.subr.mxu0 %v194
  %266 = vmatpush1.msra.mxu0 %v193
  %267 = vmatprep.subr.mxu0 %v196
  %268 = vmatpush1.msra.mxu0 %v195
  %269 = vmatprep.subr.mxu0 %v198
  %270 = vmatpush1.msra.mxu0 %v197
  %271 = vmatprep.subr.mxu0 %v200
  %272 = vmatpush1.msra.mxu0 %v199
  %273 = vmatprep.subr.mxu0 %v202
  %274 = vmatpush1.msra.mxu0 %v201
  %275 = vmatprep.subr.mxu0 %v204
  %276 = vmatpush1.msra.mxu0 %v203
  %277 = vmatprep.subr.mxu0 %v206
  %278 = vmatpush1.msra.mxu0 %v205
  %279 = vmatprep.subr.mxu0 %v208
  %280 = vmatpush1.msra.mxu0 %v207
  %281 = vmatprep.subr.mxu0 0.0
  %282 = vmatpush1.msra.mxu0 0.0
  %283 = vmatprep.subr.mxu0 0.0
  %284 = vmatpush1.msra.mxu0 0.0
  %285 = vmatprep.subr.mxu0 0.0
  %286 = vmatpush1.msra.mxu0 0.0
  %287 = vmatprep.subr.mxu0 0.0
  %288 = vmatpush1.msra.mxu0 0.0
  %289 = vmatprep.mubr.f32.mxu0 %v223
  %290 = vmatmul.mubr.f32.gmra.mrb[0].mxu0 %v151
  %v291 = vpop.f32.mrb[0].mxu0
  %v292 = vadd.f32 %v214, %v291
  %v293 = vpop.f32.mrb[0].mxu0
  %v294 = vadd.f32 %v218, %v293
  %295 = vdwg.mxu0
  %v296 = vxor.u32 %v292, 2147483648
  %v297 = vxor.u32 %v294, 2147483648
  %v298 = vmul.f32 %v296, 1.442695
  %v299 = vpow.pop %v298
  %v300 = vmul.f32 %v297, 1.442695
  %v301 = vpow.pop %v300
  %v302 = vadd.f32 %v299, 1.0
  %v303 = vadd.f32 %v301, 1.0
  %v304 = vrcp.pop %v302
  %v305 = vmul.f32 1.0, %v304
  %v306 = vrcp.pop %v303
  %v307 = vmul.f32 1.0, %v306
  %v308 = vmul.f32 %v292, %v305
  %v309 = vmul.f32 %v294, %v307
  %v310 = vld [vmem:[%s5] sm:$0xff]
  %v311 = vld [vmem:[%s5 + $0x8] sm:$0xff]
  %v312 = vld [vmem:[%s5 + $0x10] sm:$0xff]
  %v313 = vld [vmem:[%s5 + $0x18] sm:$0xff]
  %v314 = vld [vmem:[%s5 + $0x20] sm:$0xff]
  %v315 = vld [vmem:[%s5 + $0x28] sm:$0xff]
  %v316 = vld [vmem:[%s5 + $0x30] sm:$0xff]
  %v317 = vld [vmem:[%s5 + $0x38] sm:$0xff]
  %v318 = vld [vmem:[%s5 + $0x40] sm:$0xff]
  %v319 = vld [vmem:[%s5 + $0x48] sm:$0xff]
  %v320 = vld [vmem:[%s5 + $0x50] sm:$0xff]
  %v321 = vld [vmem:[%s5 + $0x58] sm:$0xff]
  %v322 = vld [vmem:[%s5 + $0x60] sm:$0xff]
  %v323 = vld [vmem:[%s5 + $0x68] sm:$0xff]
  %v324 = vld [vmem:[%s5 + $0x70] sm:$0xff]
  %v325 = vld [vmem:[%s5 + $0x78] sm:$0xff]
  %v326 = vld [vmem:[%s5 + $0x80] sm:$0xff]
  %v327 = vld [vmem:[%s5 + $0x88] sm:$0xff]
  %v328 = vld [vmem:[%s5 + $0x90] sm:$0xff]
  %v329 = vld [vmem:[%s5 + $0x98] sm:$0xff]
  %v330 = vld [vmem:[%s5 + $0xa0] sm:$0xff]
  %v331 = vld [vmem:[%s5 + $0xa8] sm:$0xff]
  %v332 = vld [vmem:[%s5 + $0xb0] sm:$0xff]
  %v333 = vld [vmem:[%s5 + $0xb8] sm:$0xff]
  %v334 = vld [vmem:[%s5 + $0xc0] sm:$0xff]
  %v335 = vld [vmem:[%s5 + $0xc8] sm:$0xff]
  %v336 = vld [vmem:[%s5 + $0xd0] sm:$0xff]
  %v337 = vld [vmem:[%s5 + $0xd8] sm:$0xff]
  %v338 = vld [vmem:[%s6] sm:$0x1]
  %v340 = vlaneseq
  %v341 = vshrl.u32 %v340, 7
  %v342 = vsub.s32 0, %v341
  %v343 = vrot.slane %v338, %v342
  %v346 = vsel %vm221, %v309, 0
  %348 = vmatprep.subr.mxu0 0.0
  %349 = vmatpush1.msra.mxu0 %v310
  %350 = vmatprep.subr.mxu0 0.0
  %351 = vmatpush1.msra.mxu0 %v311
  %352 = vmatprep.subr.mxu0 0.0
  %353 = vmatpush1.msra.mxu0 %v312
  %354 = vmatprep.subr.mxu0 0.0
  %355 = vmatpush1.msra.mxu0 %v313
  %356 = vmatprep.subr.mxu0 0.0
  %357 = vmatpush1.msra.mxu0 %v314
  %358 = vmatprep.subr.mxu0 0.0
  %359 = vmatpush1.msra.mxu0 %v315
  %360 = vmatprep.subr.mxu0 0.0
  %361 = vmatpush1.msra.mxu0 %v316
  %362 = vmatprep.subr.mxu0 0.0
  %363 = vmatpush1.msra.mxu0 %v317
  %364 = vmatprep.subr.mxu0 0.0
  %365 = vmatpush1.msra.mxu0 %v318
  %366 = vmatprep.subr.mxu0 0.0
  %367 = vmatpush1.msra.mxu0 %v319
  %368 = vmatprep.subr.mxu0 0.0
  %369 = vmatpush1.msra.mxu0 %v320
  %370 = vmatprep.subr.mxu0 0.0
  %371 = vmatpush1.msra.mxu0 %v321
  %372 = vmatprep.subr.mxu0 0.0
  %373 = vmatpush1.msra.mxu0 %v322
  %374 = vmatprep.subr.mxu0 0.0
  %375 = vmatpush1.msra.mxu0 %v323
  %376 = vmatprep.subr.mxu0 0.0
  %377 = vmatpush1.msra.mxu0 %v324
  %378 = vmatprep.subr.mxu0 0.0
  %379 = vmatpush1.msra.mxu0 %v325
  %380 = vmatprep.subr.mxu0 0.0
  %381 = vmatpush1.msra.mxu0 %v326
  %382 = vmatprep.subr.mxu0 0.0
  %383 = vmatpush1.msra.mxu0 %v327
  %384 = vmatprep.subr.mxu0 0.0
  %385 = vmatpush1.msra.mxu0 %v328
  %386 = vmatprep.subr.mxu0 0.0
  %387 = vmatpush1.msra.mxu0 %v329
  %388 = vmatprep.subr.mxu0 0.0
  %389 = vmatpush1.msra.mxu0 %v330
  %390 = vmatprep.subr.mxu0 0.0
  %391 = vmatpush1.msra.mxu0 %v331
  %392 = vmatprep.subr.mxu0 0.0
  %393 = vmatpush1.msra.mxu0 %v332
  %394 = vmatprep.subr.mxu0 0.0
  %395 = vmatpush1.msra.mxu0 %v333
  %396 = vmatprep.subr.mxu0 0.0
  %397 = vmatpush1.msra.mxu0 %v334
  %398 = vmatprep.subr.mxu0 0.0
  %399 = vmatpush1.msra.mxu0 %v335
  %400 = vmatprep.subr.mxu0 0.0
  %401 = vmatpush1.msra.mxu0 %v336
  %402 = vmatprep.subr.mxu0 0.0
  %403 = vmatpush1.msra.mxu0 %v337
  %404 = vmatprep.subr.mxu0 0.0
  %405 = vmatpush1.msra.mxu0 0.0
  %406 = vmatprep.subr.mxu0 0.0
  %407 = vmatpush1.msra.mxu0 0.0
  %408 = vmatprep.subr.mxu0 0.0
  %409 = vmatpush1.msra.mxu0 0.0
  %410 = vmatprep.subr.mxu0 0.0
  %411 = vmatpush1.msra.mxu0 0.0
  %412 = vmatprep.mubr.f32.mxu0 %v346
  %413 = vmatmul.mubr.f32.gmra.mrb[0].mxu0 %v308
  %v414 = vpop.f32.mrb[0].mxu0
  %v415 = vadd.f32 %v343, %v414
  %v416 = vpop.f32.mrb[0].mxu0
  %417 = vdwg.mxu0
  %v418 = vld [vmem:[%s7] sm:$0xff]
  %v419 = vld [vmem:[%s7 + $0x8] sm:$0xff]
  %v420 = vld [vmem:[%s7 + $0x10] sm:$0xff]
  %v421 = vld [vmem:[%s7 + $0x18] sm:$0xff]
  %v422 = vld [vmem:[%s7 + $0x20] sm:$0xff]
  %v423 = vld [vmem:[%s7 + $0x28] sm:$0xff]
  %v424 = vld [vmem:[%s7 + $0x30] sm:$0xff]
  %v425 = vld [vmem:[%s7 + $0x38] sm:$0xff]
  %v426 = vld [vmem:[%s7 + $0x40] sm:$0xff]
  %v427 = vld [vmem:[%s7 + $0x48] sm:$0xff]
  %v428 = vld [vmem:[%s7 + $0x50] sm:$0xff]
  %v429 = vld [vmem:[%s7 + $0x58] sm:$0xff]
  %v430 = vld [vmem:[%s7 + $0x60] sm:$0xff]
  %v431 = vld [vmem:[%s7 + $0x68] sm:$0xff]
  %v432 = vld [vmem:[%s7 + $0x70] sm:$0xff]
  %v433 = vld [vmem:[%s7 + $0x78] sm:$0xff]
  %v434 = vld [vmem:[%s7 + $0x80] sm:$0xff]
  %v435 = vld [vmem:[%s7 + $0x88] sm:$0xff]
  %v436 = vld [vmem:[%s7 + $0x90] sm:$0xff]
  %v437 = vld [vmem:[%s7 + $0x98] sm:$0xff]
  %v438 = vld [vmem:[%s7 + $0xa0] sm:$0xff]
  %v439 = vld [vmem:[%s7 + $0xa8] sm:$0xff]
  %v440 = vld [vmem:[%s7 + $0xb0] sm:$0xff]
  %v441 = vld [vmem:[%s7 + $0xb8] sm:$0xff]
  %v442 = vld [vmem:[%s7 + $0xc0] sm:$0xff]
  %v443 = vld [vmem:[%s7 + $0xc8] sm:$0xff]
  %v444 = vld [vmem:[%s7 + $0xd0] sm:$0xff]
  %v445 = vld [vmem:[%s7 + $0xd8] sm:$0xff]
  %v446 = vld [vmem:[%s8] sm:$0x1]
  %v448 = vlaneseq
  %v449 = vshrl.u32 %v448, 7
  %v450 = vsub.s32 0, %v449
  %v451 = vrot.slane %v446, %v450
  %453 = vmatprep.subr.mxu0 0.0
  %454 = vmatpush1.msra.mxu0 %v418
  %455 = vmatprep.subr.mxu0 0.0
  %456 = vmatpush1.msra.mxu0 %v419
  %457 = vmatprep.subr.mxu0 0.0
  %458 = vmatpush1.msra.mxu0 %v420
  %459 = vmatprep.subr.mxu0 0.0
  %460 = vmatpush1.msra.mxu0 %v421
  %461 = vmatprep.subr.mxu0 0.0
  %462 = vmatpush1.msra.mxu0 %v422
  %463 = vmatprep.subr.mxu0 0.0
  %464 = vmatpush1.msra.mxu0 %v423
  %465 = vmatprep.subr.mxu0 0.0
  %466 = vmatpush1.msra.mxu0 %v424
  %467 = vmatprep.subr.mxu0 0.0
  %468 = vmatpush1.msra.mxu0 %v425
  %469 = vmatprep.subr.mxu0 0.0
  %470 = vmatpush1.msra.mxu0 %v426
  %471 = vmatprep.subr.mxu0 0.0
  %472 = vmatpush1.msra.mxu0 %v427
  %473 = vmatprep.subr.mxu0 0.0
  %474 = vmatpush1.msra.mxu0 %v428
  %475 = vmatprep.subr.mxu0 0.0
  %476 = vmatpush1.msra.mxu0 %v429
  %477 = vmatprep.subr.mxu0 0.0
  %478 = vmatpush1.msra.mxu0 %v430
  %479 = vmatprep.subr.mxu0 0.0
  %480 = vmatpush1.msra.mxu0 %v431
  %481 = vmatprep.subr.mxu0 0.0
  %482 = vmatpush1.msra.mxu0 %v432
  %483 = vmatprep.subr.mxu0 0.0
  %484 = vmatpush1.msra.mxu0 %v433
  %485 = vmatprep.subr.mxu0 0.0
  %486 = vmatpush1.msra.mxu0 %v434
  %487 = vmatprep.subr.mxu0 0.0
  %488 = vmatpush1.msra.mxu0 %v435
  %489 = vmatprep.subr.mxu0 0.0
  %490 = vmatpush1.msra.mxu0 %v436
  %491 = vmatprep.subr.mxu0 0.0
  %492 = vmatpush1.msra.mxu0 %v437
  %493 = vmatprep.subr.mxu0 0.0
  %494 = vmatpush1.msra.mxu0 %v438
  %495 = vmatprep.subr.mxu0 0.0
  %496 = vmatpush1.msra.mxu0 %v439
  %497 = vmatprep.subr.mxu0 0.0
  %498 = vmatpush1.msra.mxu0 %v440
  %499 = vmatprep.subr.mxu0 0.0
  %500 = vmatpush1.msra.mxu0 %v441
  %501 = vmatprep.subr.mxu0 0.0
  %502 = vmatpush1.msra.mxu0 %v442
  %503 = vmatprep.subr.mxu0 0.0
  %504 = vmatpush1.msra.mxu0 %v443
  %505 = vmatprep.subr.mxu0 0.0
  %506 = vmatpush1.msra.mxu0 %v444
  %507 = vmatprep.subr.mxu0 0.0
  %508 = vmatpush1.msra.mxu0 %v445
  %509 = vmatprep.subr.mxu0 0.0
  %510 = vmatpush1.msra.mxu0 0.0
  %511 = vmatprep.subr.mxu0 0.0
  %512 = vmatpush1.msra.mxu0 0.0
  %513 = vmatprep.subr.mxu0 0.0
  %514 = vmatpush1.msra.mxu0 0.0
  %515 = vmatprep.subr.mxu0 0.0
  %516 = vmatpush1.msra.mxu0 0.0
  %517 = vmatprep.mubr.f32.mxu0 %v346
  %518 = vmatmul.mubr.f32.gmra.mrb[0].mxu0 %v308
  %v519 = vpop.f32.mrb[0].mxu0
  %v520 = vadd.f32 %v451, %v519
  %v521 = vpop.f32.mrb[0].mxu0
  %522 = vdwg.mxu0
  %v523 = vld [vmem:[%s9] sm:$0x1]
  %v524 = vld [vmem:[%s10] sm:$0x1]
  %v526 = vlaneseq
  %v527 = vshrl.u32 %v526, 7
  %v528 = vsub.s32 0, %v527
  %v529 = vrot.slane %v523, %v528
  %v531 = vsub.f32 %v529, %v520
  %v532 = vmax.f32 %v531, 0.0
  %vm533 = vcmp.ne.f32.partialorder %v531, %v531
  %v534 = vadd.f32 %v531, 0.0
  %v535 = vand.u32 2147483647, %v531
  %v536 = vsub.f32 0.0, %v535
  %v537 = vmul.f32 %v536, 1.442695
  %v538 = vpow.pop %v537
  %v539 = vadd.f32 %v538, 1.0
  %v540 = vlog2.pop %v539
  %v541 = vmul.f32 %v540, 0.6931472
  %v542 = vmul.f32 -0.5, %v538
  %v543 = vadd.f32 %v542, 1.0
  %v544 = vmul.f32 %v543, %v538
  %v545 = vand.u32 2147483647, %v538
  %vm546 = vcmp.lt.f32.partialorder %v545, 0.0004427343
  %v547 = vsel %vm546, %v544, %v541
  %v548 = vadd.f32 %v532, %v547
  %v549 = vsel %vm533, %v534, %v548
  %v550 = vsub.f32 %v529, %v549
  %v552 = vlaneseq
  %v553 = vshrl.u32 %v552, 7
  %v554 = vsub.s32 0, %v553
  %v555 = vrot.slane %v524, %v554
  %v557 = vsub.f32 %v550, %v555
  %v558 = vmax.f32 %v557, 0.0
  %vm559 = vcmp.ne.f32.partialorder %v557, %v557
  %v560 = vadd.f32 %v557, 0.0
  %v561 = vand.u32 2147483647, %v557
  %v562 = vsub.f32 0.0, %v561
  %v563 = vmul.f32 %v562, 1.442695
  %v564 = vpow.pop %v563
  %v565 = vadd.f32 %v564, 1.0
  %v566 = vlog2.pop %v565
  %v567 = vmul.f32 %v566, 0.6931472
  %v568 = vmul.f32 -0.5, %v564
  %v569 = vadd.f32 %v568, 1.0
  %v570 = vmul.f32 %v569, %v564
  %v571 = vand.u32 2147483647, %v564
  %vm572 = vcmp.lt.f32.partialorder %v571, 0.0004427343
  %v573 = vsel %vm572, %v570, %v567
  %v574 = vadd.f32 %v558, %v573
  %v575 = vsel %vm559, %v560, %v574
  %v576 = vadd.f32 %v555, %v575
  %vm577 = vcmask 687104
  %578 = vst.msk [vmem:[%s11] sm:$0xff] %vm577, %v415
  %579 = vst.msk [vmem:[%s12] sm:$0xff] %vm577, %v576
  // Predicated region
  $region46: #{ensemble_dynamics_forward.1} parent=0 // pred_check
    _
  $region47: #{ensemble_dynamics_forward.1} parent=0 // pred_check_branch
    %581 = sbr.rel (0) target = $region49
  $region48: #{ensemble_dynamics_forward.1} parent=0 // pred_region
    _
  $region49: #{ensemble_dynamics_forward.1} parent=0 // pred_fallthru
    _
  // Predicated region
  $region50: #{ensemble_dynamics_forward.1} parent=0 // pred_check
    _
  $region51: #{ensemble_dynamics_forward.1} parent=0 // pred_check_branch
    %583 = sbr.rel (0) target = $region53
  $region52: #{ensemble_dynamics_forward.1} parent=0 // pred_region
    _
  $region53: #{ensemble_dynamics_forward.1} parent=0 // pred_fallthru
    _
  // Predicated region
  $region54: #{ensemble_dynamics_forward.1} parent=0 // pred_check
    _
  $region55: #{ensemble_dynamics_forward.1} parent=0 // pred_check_branch
    %585 = sbr.rel (0) target = $region57
  $region56: #{ensemble_dynamics_forward.1} parent=0 // pred_region
    _
  $region57: #{ensemble_dynamics_forward.1} parent=0 // pred_fallthru
    _
  // Predicated region
  $region58: #{ensemble_dynamics_forward.1} parent=0 // pred_check
    _
  $region59: #{ensemble_dynamics_forward.1} parent=0 // pred_check_branch
    %587 = sbr.rel (0) target = $region61
  $region60: #{ensemble_dynamics_forward.1} parent=0 // pred_region
    _
  $region61: #{ensemble_dynamics_forward.1} parent=0 // pred_fallthru
    _

</llo_original>
